<compile_context>
chip_gen: v7x
topology: tpu7x:2x2x1
jax: 0.10.0
libtpu: 0.0.40
codegen_flags: <defaults>
</compile_context>

<pallas_src>
import math

import jax
import jax.numpy as jnp
from jax.experimental import pallas as pl
from jax.experimental.pallas import tpu as pltpu


def _round_up(x: int, m: int) -> int:
    return (x + m - 1) // m * m


def _lcm(a: int, b: int) -> int:
    return a * b // math.gcd(a, b)


# ----------------------------------------------------------------------------
# Projection kernel: h = x @ W (bf16 out), s1 = sum(h * a1), s2 = sum(h * a2)
# ----------------------------------------------------------------------------
def _proj_kernel(x_ref, w_ref, a1_ref, a2_ref, h_ref, s1_ref, s2_ref):
    h = jnp.dot(x_ref[...], w_ref[...], preferred_element_type=jnp.float32)
    h_ref[...] = h.astype(h_ref.dtype)
    # VPU multiply + lane reduce (avoids lane-width-1 MXU matvecs).
    s1_ref[...] = jnp.sum(h * a1_ref[...], axis=-1, keepdims=True)
    s2_ref[...] = jnp.sum(h * a2_ref[...], axis=-1, keepdims=True)


# ----------------------------------------------------------------------------
# Main streaming kernel over the (row, col) tiled adjacency.
# ----------------------------------------------------------------------------
def _make_gat_tile_kernel(alpha: float, concat: bool):
    def kernel(adj_ref, s1_ref, s2_ref, h_ref, out_ref, acc_ref, rowsum_ref):
        j = pl.program_id(1)

        @pl.when(j == 0)
        def _init():
            acc_ref[...] = jnp.zeros_like(acc_ref)
            rowsum_ref[...] = jnp.zeros_like(rowsum_ref)

        # e_ij = a1.h_i + a2.h_j  via pure VPU broadcast-add (no transpose).
        e = s1_ref[...] + s2_ref[...]                  # (tm,1)+(1,tn) -> (tm,tn)
        lrelu = jnp.where(e > 0.0, e, alpha * e)       # LeakyReLU(alpha)

        # Mask with a select so off-edge exp overflow can never produce NaN.
        adj_f = adj_ref[...].astype(jnp.float32)       # int8 tile -> f32 in-vreg
        edge_e = jnp.where(adj_f != 0.0, jnp.exp(-lrelu), 0.0)

        rowsum_ref[...] += jnp.sum(edge_e, axis=1, keepdims=True)
        acc_ref[...] += jnp.dot(edge_e.astype(jnp.bfloat16), h_ref[...],
                                preferred_element_type=jnp.float32)

        @pl.when(j == pl.num_programs(1) - 1)
        def _finalize():
            rs = jnp.maximum(rowsum_ref[...], 1e-20)   # guard empty rows
            hp = acc_ref[...] * pl.reciprocal(rs, approx=True)
            if concat:
                # ELU (clamp the exp argument so large positives don't overflow
                # in the unselected branch).
                hp = jnp.where(hp > 0.0, hp,
                               jnp.exp(jnp.minimum(hp, 0.0)) - 1.0)
            out_ref[...] = hp.astype(out_ref.dtype)

    return kernel


# ----------------------------------------------------------------------------
# Wrapper
# ----------------------------------------------------------------------------
def sp_graph_attention_layer(x, W, a, adj, *, alpha=0.2, concat=True,
                             block_m=256, block_n=512):
    """Forward pass of SpGraphAttentionLayer (eval mode).

    x   : (N, F_in) float
    W   : (F_in, F_out) float
    a   : (1, 2*F_out) float
    adj : (N, N) adjacency mask (any numeric dtype; nonzero == edge)
    """
    N, F_in = x.shape
    F_out = W.shape[1]

    # Tile sizes: lane dim multiple of 128, row dim multiple of 32 (int8 adj).
    block_n = max(128, _round_up(min(block_n, _round_up(N, 128)), 128))
    block_m = max(32, _round_up(min(block_m, _round_up(N, 32)), 32))
    n_pad = _round_up(N, _lcm(block_m, block_n))

    f32 = jnp.float32
    x_p = jnp.zeros((n_pad, F_in), f32).at[:N].set(x.astype(f32))
    adj_i8 = jnp.zeros((n_pad, n_pad), jnp.int8).at[:N, :N].set(
        (adj != 0).astype(jnp.int8))
    a1 = a[:, :F_out].astype(f32)
    a2 = a[:, F_out:].astype(f32)

    # ---- projection (row-tiled, small) ----
    tp = block_m
    h_b, s1, s2 = pl.pallas_call(
        _proj_kernel,
        out_shape=(jax.ShapeDtypeStruct((n_pad, F_out), jnp.bfloat16),
                   jax.ShapeDtypeStruct((n_pad, 1), f32),
                   jax.ShapeDtypeStruct((n_pad, 1), f32)),
        grid=(n_pad // tp,),
        in_specs=[
            pl.BlockSpec((tp, F_in), lambda r: (r, 0)),
            pl.BlockSpec((F_in, F_out), lambda r: (0, 0)),
            pl.BlockSpec((1, F_out), lambda r: (0, 0)),
            pl.BlockSpec((1, F_out), lambda r: (0, 0)),
        ],
        out_specs=(
            pl.BlockSpec((tp, F_out), lambda r: (r, 0)),
            pl.BlockSpec((tp, 1), lambda r: (r, 0)),
            pl.BlockSpec((tp, 1), lambda r: (r, 0)),
        ),
        compiler_params=pltpu.CompilerParams(
            dimension_semantics=("parallel",)),
    )(x_p, W.astype(f32), a1, a2)

    # One-time layout fix: s2 as a lane-major (1, N_pad) row.
    s2_row = s2.reshape(1, n_pad)

    # ---- streaming attention / aggregation over the tiled adjacency ----
    grid = (n_pad // block_m, n_pad // block_n)
    out_p = pl.pallas_call(
        _make_gat_tile_kernel(float(alpha), bool(concat)),
        out_shape=jax.ShapeDtypeStruct((n_pad, F_out), f32),
        grid=grid,
        in_specs=[
            pl.BlockSpec((block_m, block_n), lambda i, j: (i, j)),   # adj int8
            pl.BlockSpec((block_m, 1), lambda i, j: (i, 0)),          # s1
            pl.BlockSpec((1, block_n), lambda i, j: (0, j)),          # s2 row
            pl.BlockSpec((block_n, F_out), lambda i, j: (j, 0)),      # h (bf16)
        ],
        out_specs=pl.BlockSpec((block_m, F_out), lambda i, j: (i, 0)),
        scratch_shapes=[
            pltpu.VMEM((block_m, F_out), f32),   # edge_e @ h accumulator
            pltpu.VMEM((block_m, 1), f32),       # rowsum accumulator
        ],
        compiler_params=pltpu.CompilerParams(
            dimension_semantics=("parallel", "arbitrary"),
            vmem_limit_bytes=32 * 1024 * 1024),
    )(adj_i8, s1, s2_row, h_b)

    return out_p[:N]


# ----------------------------------------------------------------------------
# Pure-JAX reference (dense equivalent of the PyTorch module, eval mode)
# ----------------------------------------------------------------------------
def _reference(x, W, a, adj, alpha, concat):
    F_out = W.shape[1]
    h = x @ W
    s1 = h @ a[:, :F_out].T
    s2 = h @ a[:, F_out:].T
    e = s1 + s2.T
    lrelu = jnp.where(e > 0, e, alpha * e)
    edge_e = jnp.where(adj != 0, jnp.exp(-lrelu), 0.0)
    rowsum = jnp.sum(edge_e, axis=1, keepdims=True)
    h_prime = (edge_e @ h) / rowsum
    if concat:
        h_prime = jnp.where(h_prime > 0, h_prime,
                            jnp.exp(jnp.minimum(h_prime, 0.0)) - 1.0)
    return h_prime


if __name__ == "__main__":
    # Small shapes that still exercise the 2-D tiled grid (grid = (4, 2))
    # including padding (192 -> 256) and multi-step accumulation along j.
    N = 192
    in_features = 32
    out_features = 16
    alpha = 0.2          # LeakyReLU negative slope
    # dropout = 0.0 (eval mode)

    key = jax.random.PRNGKey(0)
    k_x, k_w, k_a, k_adj = jax.random.split(key, 4)

    x = jax.random.normal(k_x, (N, in_features), dtype=jnp.float32)

    # Deterministic parameter init (xavier_normal_, gain=1.414).
    gain = 1.414
    w_std = gain * (2.0 / (in_features + out_features)) ** 0.5
    W = w_std * jax.random.normal(k_w, (in_features, out_features), dtype=jnp.float32)
    a_std = gain * (2.0 / (1 + 2 * out_features)) ** 0.5
    a = a_std * jax.random.normal(k_a, (1, 2 * out_features), dtype=jnp.float32)

    # Sparse adjacency as a 0/1 mask; self-loops keep every rowsum nonzero
    # (as the PyTorch reference assumes).
    adj = jax.random.bernoulli(k_adj, p=0.3, shape=(N, N)).astype(jnp.float32)
    adj = jnp.maximum(adj, jnp.eye(N, dtype=jnp.float32))

    out = sp_graph_attention_layer(x, W, a, adj, alpha=alpha, concat=True,
                                   block_m=64, block_n=128)
    out = jax.block_until_ready(out)

    ref = _reference(x, W, a, adj, alpha, True)

    assert out.shape == (N, out_features)
    assert bool(jnp.all(jnp.isfinite(out)))
    max_err = float(jnp.max(jnp.abs(out - ref)))
    assert max_err < 0.1, f"max_err={max_err}"
    print("KERNEL_OK")
</pallas_src>

<mosaic_0001>
module attributes {stable_mosaic.version = 11 : i64} {
  func.func @_proj_kernel(%arg0: i32, %arg1: memref<64x32xf32, #tpu.memory_space<vmem>>, %arg2: memref<32x16xf32, #tpu.memory_space<vmem>>, %arg3: memref<1x16xf32, #tpu.memory_space<vmem>>, %arg4: memref<1x16xf32, #tpu.memory_space<vmem>>, %arg5: memref<64x16xbf16, #tpu.memory_space<vmem>>, %arg6: memref<64x1xf32, #tpu.memory_space<vmem>>, %arg7: memref<64x1xf32, #tpu.memory_space<vmem>>) attributes {dimension_semantics = [#tpu.dimension_semantics<parallel>], iteration_bounds = array<i64: 4>, scalar_prefetch = 0 : i64, scratch_operands = 0 : i64, tpu.core_type = #tpu.core_type<tc>, window_params = [{transform_indices = @transform_0, window_bounds = array<i64: 64, 32>}, {pipeline_mode = #tpu.pipeline_mode<synchronous>, transform_indices = @transform_1, window_bounds = array<i64: 32, 16>}, {pipeline_mode = #tpu.pipeline_mode<synchronous>, transform_indices = @transform_2, window_bounds = array<i64: 1, 16>}, {pipeline_mode = #tpu.pipeline_mode<synchronous>, transform_indices = @transform_3, window_bounds = array<i64: 1, 16>}, {transform_indices = @transform_4, window_bounds = array<i64: 64, 16>}, {transform_indices = @transform_5, window_bounds = array<i64: 64, 1>}, {transform_indices = @transform_6, window_bounds = array<i64: 64, 1>}]} {
    %c0 = arith.constant 0 : index
    %c0_0 = arith.constant 0 : index
    %0 = vector.load %arg1[%c0, %c0_0] : memref<64x32xf32, #tpu.memory_space<vmem>>, vector<64x32xf32>
    %c0_1 = arith.constant 0 : index
    %c0_2 = arith.constant 0 : index
    %1 = vector.load %arg2[%c0_1, %c0_2] : memref<32x16xf32, #tpu.memory_space<vmem>>, vector<32x16xf32>
    %cst = arith.constant dense<0.000000e+00> : vector<64x16xf32>
    %2 = tpu.matmul %0, %1, %cst {dimension_numbers = #tpu.dot_dimension_numbers<[1], [0], [0], [1], [0, 0, 1, 1], [], []>} : vector<64x32xf32>, vector<32x16xf32>, vector<64x16xf32> -> vector<64x16xf32>
    %3 = arith.truncf %2 : vector<64x16xf32> to vector<64x16xbf16>
    %c0_3 = arith.constant 0 : index
    %c0_4 = arith.constant 0 : index
    %4 = vector.load %arg5[%c0_3, %c0_4] : memref<64x16xbf16, #tpu.memory_space<vmem>>, vector<64x16xbf16>
    tpu.vector_store %arg5[%c0_3, %c0_4], %3 {strides = array<i32>} : memref<64x16xbf16, #tpu.memory_space<vmem>>, vector<64x16xbf16>,
    %c0_5 = arith.constant 0 : index
    %c0_6 = arith.constant 0 : index
    %5 = vector.load %arg3[%c0_5, %c0_6] : memref<1x16xf32, #tpu.memory_space<vmem>>, vector<1x16xf32>
    %6 = vector.broadcast %5 : vector<1x16xf32> to vector<64x16xf32>
    %7 = arith.mulf %2, %6 : vector<64x16xf32>
    %cst_7 = arith.constant dense<0.000000e+00> : vector<64xf32>
    %8 = vector.multi_reduction <add>, %7, %cst_7 [1] : vector<64x16xf32> to vector<64xf32>
    %9 = vector.shape_cast %8 : vector<64xf32> to vector<64x1xf32>
    %c0_8 = arith.constant 0 : index
    %c0_9 = arith.constant 0 : index
    %10 = vector.load %arg6[%c0_8, %c0_9] : memref<64x1xf32, #tpu.memory_space<vmem>>, vector<64x1xf32>
    tpu.vector_store %arg6[%c0_8, %c0_9], %9 {strides = array<i32>} : memref<64x1xf32, #tpu.memory_space<vmem>>, vector<64x1xf32>,
    %c0_10 = arith.constant 0 : index
    %c0_11 = arith.constant 0 : index
    %11 = vector.load %arg4[%c0_10, %c0_11] : memref<1x16xf32, #tpu.memory_space<vmem>>, vector<1x16xf32>
    %12 = vector.broadcast %11 : vector<1x16xf32> to vector<64x16xf32>
    %13 = arith.mulf %2, %12 : vector<64x16xf32>
    %cst_12 = arith.constant dense<0.000000e+00> : vector<64xf32>
    %14 = vector.multi_reduction <add>, %13, %cst_12 [1] : vector<64x16xf32> to vector<64xf32>
    %15 = vector.shape_cast %14 : vector<64xf32> to vector<64x1xf32>
    %c0_13 = arith.constant 0 : index
    %c0_14 = arith.constant 0 : index
    %16 = vector.load %arg7[%c0_13, %c0_14] : memref<64x1xf32, #tpu.memory_space<vmem>>, vector<64x1xf32>
    tpu.vector_store %arg7[%c0_13, %c0_14], %15 {strides = array<i32>} : memref<64x1xf32, #tpu.memory_space<vmem>>, vector<64x1xf32>,
    return
  }
  func.func @transform_0(%arg0: i32) -> (i32, i32) {
    %c0_i32 = arith.constant 0 : i32
    %c0_i32_0 = arith.constant 0 : i32
    return %arg0, %c0_i32 : i32, i32
  }
  func.func @transform_1(%arg0: i32) -> (i32, i32) {
    %c0_i32 = arith.constant 0 : i32
    %c0_i32_0 = arith.constant 0 : i32
    %c0_i32_1 = arith.constant 0 : i32
    return %c0_i32, %c0_i32_0 : i32, i32
  }
  func.func @transform_2(%arg0: i32) -> (i32, i32) {
    %c0_i32 = arith.constant 0 : i32
    %c0_i32_0 = arith.constant 0 : i32
    %c0_i32_1 = arith.constant 0 : i32
    return %c0_i32, %c0_i32_0 : i32, i32
  }
  func.func @transform_3(%arg0: i32) -> (i32, i32) {
    %c0_i32 = arith.constant 0 : i32
    %c0_i32_0 = arith.constant 0 : i32
    %c0_i32_1 = arith.constant 0 : i32
    return %c0_i32, %c0_i32_0 : i32, i32
  }
  func.func @transform_4(%arg0: i32) -> (i32, i32) {
    %c0_i32 = arith.constant 0 : i32
    %c0_i32_0 = arith.constant 0 : i32
    return %arg0, %c0_i32 : i32, i32
  }
  func.func @transform_5(%arg0: i32) -> (i32, i32) {
    %c0_i32 = arith.constant 0 : i32
    %c0_i32_0 = arith.constant 0 : i32
    return %arg0, %c0_i32 : i32, i32
  }
  func.func @transform_6(%arg0: i32) -> (i32, i32) {
    %c0_i32 = arith.constant 0 : i32
    %c0_i32_0 = arith.constant 0 : i32
    return %arg0, %c0_i32 : i32, i32
  }
}

</mosaic_0001>

<llo_original>
// kernel: tpu_custom_call.1
$region0: #{tpu_custom_call.1}
  #allocation0 [shape = 'u32[]', space=smem, size = 0x4, offset = 0x4, fixed_abs, tag = 'smem constant byte address 0x4 - core index']
  #allocation1 [shape = 'u32[144,128]{1,0:T(1,128)}', space=vmem, size = 0x12000, scoped, tag = 'internal scratch']
  %s0 = inlined_call_operand.vmem [shape: f32[256,32], index: 0, kind: input, shape index: {}]
  %s1 = inlined_call_operand.vmem [shape: f32[32,16], index: 1, kind: input, shape index: {}]
  %s2 = inlined_call_operand.vmem [shape: f32[1,16], index: 2, kind: input, shape index: {}]
  %s3 = inlined_call_operand.vmem [shape: f32[1,16], index: 3, kind: input, shape index: {}]
  %s4 = inlined_call_operand.vmem [shape: bf16[256,16], index: 4, kind: output, shape index: {0}]
  %s5 = inlined_call_operand.vmem [shape: f32[256,1], index: 5, kind: output, shape index: {1}]
  %s6 = inlined_call_operand.vmem [shape: f32[256,1], index: 6, kind: output, shape index: {2}]
  %7 = xla_tuple %s4, %s5, %s6
  %s8 = sld [smem:[#allocation0]]
  $region65: #{tpu_custom_call.1} parent=0
    _
  %s10 = ssub.s32 1, %s8
  %s11 = scalar_select 0, %s10, %s8
  loop: start=0, step=1, limit=6
  $region2: #{tpu_custom_call.1} parent=0 // loop_pre_header
    _
  $region3: #{tpu_custom_call.1} parent=0 // loop_header
    %s13 = sphi 0, %s17
    %p14 = scmp.ge.s32.totalorder %s13, 6
    %s23 = sphi 0, %s25
    %s26 = sphi 0, %s23
    %s27 = sphi 0, %s26
    %s43 = sphi 0, %s27
    %s47 = sphi 0, %s47
    %s49 = sphi 0, %s47
    %s50 = sphi 0, %s49
    %s64 = sphi 0, %s50
    %s68 = sphi 0, %s68
    %s70 = sphi 0, %s68
    %s71 = sphi 0, %s70
    %s85 = sphi 0, %s71
    %s89 = sphi 0, %s89
    %s91 = sphi 0, %s89
    %s92 = sphi 0, %s91
    %s106 = sphi 0, %s92
    %s112 = sphi 0, %s114
    %s115 = sphi 0, %s112
    %s116 = sphi 0, %s115
    %s132 = sphi 0, %s116
    %s138 = sphi 0, %s140
    %s141 = sphi 0, %s138
    %s142 = sphi 0, %s141
    %s158 = sphi 0, %s142
    %s164 = sphi 0, %s166
    %s167 = sphi 0, %s164
    %s168 = sphi 0, %s167
    %s184 = sphi 0, %s168
  $region4: #{tpu_custom_call.1} parent=0 // loop_header_branch
    %16 = sbr.rel (%p14) target = $region8
  $region5: #{tpu_custom_call.1} parent=0 // loop_body
    %s18 = ssub.s32 %s13, 1
    %s19 = ssub.s32 %s13, 2
    %s20 = sadd.s32 %s13, 1
    %s21 = ssub.s32 %s13, %s20
    %p22 = scmp.eq.s32.totalorder %s21, 0
    %s24 = sadd.s32 %s23, 1
    %s25 = scalar_select %p22, %s23, %s24
    %p28 = pneg %p22
    %p29 = scmp.eq.s32.totalorder %s13, 3
    %p30 = por %p28, %p29
    %p31 = scmp.ne.s32.totalorder %s23, %s26
    %p32 = scmp.eq.s32.totalorder %s13, 0
    %p33 = por %p31, %p32
    %p34 = scmp.ne.s32.totalorder %s23, %s26
    %p35 = scmp.eq.s32.totalorder %s18, 3
    %p36 = por %p34, %p35
    %p37 = scmp.ne.s32.totalorder %s26, %s27
    %p38 = scmp.eq.s32.totalorder %s18, 0
    %p39 = por %p37, %p38
    %p40 = scmp.ne.s32.totalorder %s26, %s27
    %p41 = scmp.eq.s32.totalorder %s19, 3
    %p42 = por %p40, %p41
    %p44 = scmp.ne.s32.totalorder %s27, %s43
    %p45 = scmp.eq.s32.totalorder %s19, 0
    %p46 = por %p44, %p45
    %s48 = sadd.s32 %s47, 1
    %p51 = scmp.eq.s32.totalorder %s13, 3
    %p52 = scmp.ne.s32.totalorder %s47, %s49
    %p53 = scmp.eq.s32.totalorder %s13, 0
    %p54 = por %p52, %p53
    %p55 = scmp.ne.s32.totalorder %s47, %s49
    %p56 = scmp.eq.s32.totalorder %s18, 3
    %p57 = por %p55, %p56
    %p58 = scmp.ne.s32.totalorder %s49, %s50
    %p59 = scmp.eq.s32.totalorder %s18, 0
    %p60 = por %p58, %p59
    %p61 = scmp.ne.s32.totalorder %s49, %s50
    %p62 = scmp.eq.s32.totalorder %s19, 3
    %p63 = por %p61, %p62
    %p65 = scmp.ne.s32.totalorder %s50, %s64
    %p66 = scmp.eq.s32.totalorder %s19, 0
    %p67 = por %p65, %p66
    %s69 = sadd.s32 %s68, 1
    %p72 = scmp.eq.s32.totalorder %s13, 3
    %p73 = scmp.ne.s32.totalorder %s68, %s70
    %p74 = scmp.eq.s32.totalorder %s13, 0
    %p75 = por %p73, %p74
    %p76 = scmp.ne.s32.totalorder %s68, %s70
    %p77 = scmp.eq.s32.totalorder %s18, 3
    %p78 = por %p76, %p77
    %p79 = scmp.ne.s32.totalorder %s70, %s71
    %p80 = scmp.eq.s32.totalorder %s18, 0
    %p81 = por %p79, %p80
    %p82 = scmp.ne.s32.totalorder %s70, %s71
    %p83 = scmp.eq.s32.totalorder %s19, 3
    %p84 = por %p82, %p83
    %p86 = scmp.ne.s32.totalorder %s71, %s85
    %p87 = scmp.eq.s32.totalorder %s19, 0
    %p88 = por %p86, %p87
    %s90 = sadd.s32 %s89, 1
    %p93 = scmp.eq.s32.totalorder %s13, 3
    %p94 = scmp.ne.s32.totalorder %s89, %s91
    %p95 = scmp.eq.s32.totalorder %s13, 0
    %p96 = por %p94, %p95
    %p97 = scmp.ne.s32.totalorder %s89, %s91
    %p98 = scmp.eq.s32.totalorder %s18, 3
    %p99 = por %p97, %p98
    %p100 = scmp.ne.s32.totalorder %s91, %s92
    %p101 = scmp.eq.s32.totalorder %s18, 0
    %p102 = por %p100, %p101
    %p103 = scmp.ne.s32.totalorder %s91, %s92
    %p104 = scmp.eq.s32.totalorder %s19, 3
    %p105 = por %p103, %p104
    %p107 = scmp.ne.s32.totalorder %s92, %s106
    %p108 = scmp.eq.s32.totalorder %s19, 0
    %p109 = por %p107, %p108
    %s110 = ssub.s32 %s13, %s20
    %p111 = scmp.eq.s32.totalorder %s110, 0
    %s113 = sadd.s32 %s112, 1
    %s114 = scalar_select %p111, %s112, %s113
    %p117 = pneg %p111
    %p118 = scmp.eq.s32.totalorder %s13, 3
    %p119 = por %p117, %p118
    %p120 = scmp.ne.s32.totalorder %s112, %s115
    %p121 = scmp.eq.s32.totalorder %s13, 0
    %p122 = por %p120, %p121
    %p123 = scmp.ne.s32.totalorder %s112, %s115
    %p124 = scmp.eq.s32.totalorder %s18, 3
    %p125 = por %p123, %p124
    %p126 = scmp.ne.s32.totalorder %s115, %s116
    %p127 = scmp.eq.s32.totalorder %s18, 0
    %p128 = por %p126, %p127
    %p129 = scmp.ne.s32.totalorder %s115, %s116
    %p130 = scmp.eq.s32.totalorder %s19, 3
    %p131 = por %p129, %p130
    %p133 = scmp.ne.s32.totalorder %s116, %s132
    %p134 = scmp.eq.s32.totalorder %s19, 0
    %p135 = por %p133, %p134
    %s136 = ssub.s32 %s13, %s20
    %p137 = scmp.eq.s32.totalorder %s136, 0
    %s139 = sadd.s32 %s138, 1
    %s140 = scalar_select %p137, %s138, %s139
    %p143 = pneg %p137
    %p144 = scmp.eq.s32.totalorder %s13, 3
    %p145 = por %p143, %p144
    %p146 = scmp.ne.s32.totalorder %s138, %s141
    %p147 = scmp.eq.s32.totalorder %s13, 0
    %p148 = por %p146, %p147
    %p149 = scmp.ne.s32.totalorder %s138, %s141
    %p150 = scmp.eq.s32.totalorder %s18, 3
    %p151 = por %p149, %p150
    %p152 = scmp.ne.s32.totalorder %s141, %s142
    %p153 = scmp.eq.s32.totalorder %s18, 0
    %p154 = por %p152, %p153
    %p155 = scmp.ne.s32.totalorder %s141, %s142
    %p156 = scmp.eq.s32.totalorder %s19, 3
    %p157 = por %p155, %p156
    %p159 = scmp.ne.s32.totalorder %s142, %s158
    %p160 = scmp.eq.s32.totalorder %s19, 0
    %p161 = por %p159, %p160
    %s162 = ssub.s32 %s13, %s20
    %p163 = scmp.eq.s32.totalorder %s162, 0
    %s165 = sadd.s32 %s164, 1
    %s166 = scalar_select %p163, %s164, %s165
    %p169 = pneg %p163
    %p170 = scmp.eq.s32.totalorder %s13, 3
    %p171 = por %p169, %p170
    %p172 = scmp.ne.s32.totalorder %s164, %s167
    %p173 = scmp.eq.s32.totalorder %s13, 0
    %p174 = por %p172, %p173
    %p175 = scmp.ne.s32.totalorder %s164, %s167
    %p176 = scmp.eq.s32.totalorder %s18, 3
    %p177 = por %p175, %p176
    %p178 = scmp.ne.s32.totalorder %s167, %s168
    %p179 = scmp.eq.s32.totalorder %s18, 0
    %p180 = por %p178, %p179
    %p181 = scmp.ne.s32.totalorder %s167, %s168
    %p182 = scmp.eq.s32.totalorder %s19, 3
    %p183 = por %p181, %p182
    %p185 = scmp.ne.s32.totalorder %s168, %s184
    %p186 = scmp.eq.s32.totalorder %s19, 0
    %p187 = por %p185, %p186
    %p188 = scmp.le.s32.totalorder 1, %s13
    %p189 = scmp.lt.s32.totalorder %s13, 5
    %p190 = pnand %p188, %p189
    %p191 = pneg %p190
    // Predicated region
    $region9: #{tpu_custom_call.1} parent=5 // pred_check
      _
    $region10: #{tpu_custom_call.1} parent=5 // pred_check_branch
      %193 = sbr.rel (%p190) target = $region12
    $region11: #{tpu_custom_call.1} parent=5 // pred_region
      %s194 = ssub.s32 %s13, 1
      // Predicated region
      $region13: #{tpu_custom_call.1} parent=11 // pred_check
        %p195 = pneg %p60
      $region14: #{tpu_custom_call.1} parent=11 // pred_check_branch
        %197 = sbr.rel (%p195) target = $region16
      $region15: #{tpu_custom_call.1} parent=11 // pred_region
        _
      $region16: #{tpu_custom_call.1} parent=11 // pred_fallthru
        _
      // Predicated region
      $region17: #{tpu_custom_call.1} parent=11 // pred_check
        %p198 = pneg %p81
      $region18: #{tpu_custom_call.1} parent=11 // pred_check_branch
        %200 = sbr.rel (%p198) target = $region20
      $region19: #{tpu_custom_call.1} parent=11 // pred_region
        _
      $region20: #{tpu_custom_call.1} parent=11 // pred_fallthru
        _
      // Predicated region
      $region21: #{tpu_custom_call.1} parent=11 // pred_check
        %p201 = pneg %p102
      $region22: #{tpu_custom_call.1} parent=11 // pred_check_branch
        %203 = sbr.rel (%p201) target = $region24
      $region23: #{tpu_custom_call.1} parent=11 // pred_region
        _
      $region24: #{tpu_custom_call.1} parent=11 // pred_fallthru
        _
    $region12: #{tpu_custom_call.1} parent=5 // pred_fallthru
      _
    %p204 = scmp.lt.s32.totalorder %s13, 4
    // Predicated region
    $region25: #{tpu_custom_call.1} parent=5 // pred_check
      %p205 = pneg %p204
    $region26: #{tpu_custom_call.1} parent=5 // pred_check_branch
      %207 = sbr.rel (%p205) target = $region28
    $region27: #{tpu_custom_call.1} parent=5 // pred_region
      // Predicated region
      $region29: #{tpu_custom_call.1} parent=27 // pred_check
        %p208 = pneg %p33
      $region30: #{tpu_custom_call.1} parent=27 // pred_check_branch
        %210 = sbr.rel (%p208) target = $region32
      $region31: #{tpu_custom_call.1} parent=27 // pred_region
        %s211 = smul.u32 8, %s13
        %p212 = scmp.lt.s32.totalorder %s211, 31
        %s213 = scalar_select %p212, %s211, 31
        %s214 = smul.addr %s213, 8
        %s215 = scalar_lea.vmem %s0, %s214
        %s216 = smul.u32 8, %s13
      $region32: #{tpu_custom_call.1} parent=27 // pred_fallthru
        _
    $region28: #{tpu_custom_call.1} parent=5 // pred_fallthru
      _
    %p217 = scmp.le.s32.totalorder 1, %s13
    %p218 = scmp.lt.s32.totalorder %s13, 5
    %p219 = pnand %p217, %p218
    %p220 = pneg %p219
    // Predicated region
    $region33: #{tpu_custom_call.1} parent=5 // pred_check
      _
    $region34: #{tpu_custom_call.1} parent=5 // pred_check_branch
      %222 = sbr.rel (%p219) target = $region36
    $region35: #{tpu_custom_call.1} parent=5 // pred_region
      %s223 = ssub.s32 %s13, 1
      %s224 = smul.u32 8, %s18
      %p225 = scmp.lt.s32.totalorder %s224, 31
      %s226 = scalar_select %p225, %s224, 31
      %s227 = smul.addr %s226, 8
      %s228 = scalar_lea.vmem %s0, %s227
      %p229 = pneg %p39
      %p230 = pneg %p36
      %p231 = pneg %p60
      %p232 = pneg %p57
      %p233 = pneg %p81
      %p234 = pneg %p78
      %p235 = pneg %p102
      %p236 = pneg %p99
      %p237 = pneg %p128
      %p238 = pneg %p125
      %s239 = smul.u32 8, %s18
      %p240 = scmp.lt.s32.totalorder %s239, 31
      %s241 = scalar_select %p240, %s239, 31
      %s242 = smul.addr %s241, 4
      %s243 = scalar_lea.vmem %s4, %s242
      %p244 = pneg %p154
      %p245 = pneg %p151
      %s246 = smul.u32 8, %s18
      %p247 = scmp.lt.s32.totalorder %s246, 31
      %s248 = scalar_select %p247, %s246, 31
      %s249 = smul.addr %s248, 8
      %s250 = scalar_lea.vmem %s5, %s249
      %p251 = pneg %p180
      %p252 = pneg %p177
      %s253 = smul.u32 8, %s18
      %p254 = scmp.lt.s32.totalorder %s253, 31
      %s255 = scalar_select %p254, %s253, 31
      %s256 = smul.addr %s255, 8
      %s257 = scalar_lea.vmem %s6, %s256
      %s258 = smul.u32 8, %s18
      %p259 = scmp.lt.s32.totalorder %s258, 31
      %s260 = scalar_select %p259, %s258, 31
      %s261 = smul.addr %s260, 8
      %s262 = scalar_lea.vmem %s0, %s261
      %s263 = smul.u32 8, %s18
      %s264 = smul.u32 8, %s18
      %p265 = scmp.lt.s32.totalorder %s264, 31
      %s266 = scalar_select %p265, %s264, 31
      %s267 = smul.addr %s266, 4
      %s268 = scalar_lea.vmem %s4, %s267
      %s269 = smul.u32 8, %s18
      %s270 = smul.u32 8, %s18
      %p271 = scmp.lt.s32.totalorder %s270, 31
      %s272 = scalar_select %p271, %s270, 31
      %s273 = smul.addr %s272, 8
      %s274 = scalar_lea.vmem %s5, %s273
      %s275 = smul.u32 8, %s18
      %s276 = smul.u32 8, %s18
      %p277 = scmp.lt.s32.totalorder %s276, 31
      %s278 = scalar_select %p277, %s276, 31
      %s279 = smul.addr %s278, 8
      %s280 = scalar_lea.vmem %s6, %s279
      %s281 = smul.u32 8, %s18
      %v282 = vld [vmem:[%s262] sm:$0xff]
      %v283 = vld [vmem:[%s262 + $0x8] sm:$0xff]
      %v284 = vld [vmem:[%s262 + $0x10] sm:$0xff]
      %v285 = vld [vmem:[%s262 + $0x18] sm:$0xff]
      %v286 = vld [vmem:[%s262 + $0x20] sm:$0xff]
      %v287 = vld [vmem:[%s262 + $0x28] sm:$0xff]
      %v288 = vld [vmem:[%s262 + $0x30] sm:$0xff]
      %v289 = vld [vmem:[%s262 + $0x38] sm:$0xff]
      %v290 = vld [vmem:[%s1] sm:$0xff]
      %v291 = vld [vmem:[%s1 + $0x8] sm:$0xff]
      %v292 = vld [vmem:[%s1 + $0x10] sm:$0xff]
      %v293 = vld [vmem:[%s1 + $0x18] sm:$0xff]
      %vm294 = vcmask 261120
      %v296 = vsel %vm294, %v282, 0
      %v299 = vsel %vm294, %v283, 0
      %v302 = vsel %vm294, %v284, 0
      %v305 = vsel %vm294, %v285, 0
      %v308 = vsel %vm294, %v286, 0
      %v311 = vsel %vm294, %v287, 0
      %v314 = vsel %vm294, %v288, 0
      %v317 = vsel %vm294, %v289, 0
      %319 = vmatprep.subr.mxu0 0.0
      %320 = vmatpush1.msra.mxu0 %v290
      %321 = vmatprep.subr.mxu0 0.0
      %322 = vmatpush1.msra.mxu0 %v291
      %323 = vmatprep.subr.mxu0 0.0
      %324 = vmatpush1.msra.mxu0 %v292
      %325 = vmatprep.subr.mxu0 0.0
      %326 = vmatpush1.msra.mxu0 %v293
      %327 = vmatprep.subr.mxu0 0.0
      %328 = vmatpush1.msra.mxu0 0.0
      %329 = vmatprep.subr.mxu0 0.0
      %330 = vmatpush1.msra.mxu0 0.0
      %331 = vmatprep.subr.mxu0 0.0
      %332 = vmatpush1.msra.mxu0 0.0
      %333 = vmatprep.subr.mxu0 0.0
      %334 = vmatpush1.msra.mxu0 0.0
      %335 = vmatprep.subr.mxu0 0.0
      %336 = vmatpush1.msra.mxu0 0.0
      %337 = vmatprep.subr.mxu0 0.0
      %338 = vmatpush1.msra.mxu0 0.0
      %339 = vmatprep.subr.mxu0 0.0
      %340 = vmatpush1.msra.mxu0 0.0
      %341 = vmatprep.subr.mxu0 0.0
      %342 = vmatpush1.msra.mxu0 0.0
      %343 = vmatprep.subr.mxu0 0.0
      %344 = vmatpush1.msra.mxu0 0.0
      %345 = vmatprep.subr.mxu0 0.0
      %346 = vmatpush1.msra.mxu0 0.0
      %347 = vmatprep.subr.mxu0 0.0
      %348 = vmatpush1.msra.mxu0 0.0
      %349 = vmatprep.subr.mxu0 0.0
      %350 = vmatpush1.msra.mxu0 0.0
      %351 = vmatprep.subr.mxu0 0.0
      %352 = vmatpush1.msra.mxu0 0.0
      %353 = vmatprep.subr.mxu0 0.0
      %354 = vmatpush1.msra.mxu0 0.0
      %355 = vmatprep.subr.mxu0 0.0
      %356 = vmatpush1.msra.mxu0 0.0
      %357 = vmatprep.subr.mxu0 0.0
      %358 = vmatpush1.msra.mxu0 0.0
      %359 = vmatprep.subr.mxu0 0.0
      %360 = vmatpush1.msra.mxu0 0.0
      %361 = vmatprep.subr.mxu0 0.0
      %362 = vmatpush1.msra.mxu0 0.0
      %363 = vmatprep.subr.mxu0 0.0
      %364 = vmatpush1.msra.mxu0 0.0
      %365 = vmatprep.subr.mxu0 0.0
      %366 = vmatpush1.msra.mxu0 0.0
      %367 = vmatprep.subr.mxu0 0.0
      %368 = vmatpush1.msra.mxu0 0.0
      %369 = vmatprep.subr.mxu0 0.0
      %370 = vmatpush1.msra.mxu0 0.0
      %371 = vmatprep.subr.mxu0 0.0
      %372 = vmatpush1.msra.mxu0 0.0
      %373 = vmatprep.subr.mxu0 0.0
      %374 = vmatpush1.msra.mxu0 0.0
      %375 = vmatprep.subr.mxu0 0.0
      %376 = vmatpush1.msra.mxu0 0.0
      %377 = vmatprep.subr.mxu0 0.0
      %378 = vmatpush1.msra.mxu0 0.0
      %379 = vmatprep.subr.mxu0 0.0
      %380 = vmatpush1.msra.mxu0 0.0
      %381 = vmatprep.subr.mxu0 0.0
      %382 = vmatpush1.msra.mxu0 0.0
      %383 = vmatprep.mubr.f32.mxu0 0.0
      %384 = vmatmul.mubr.f32.gmra.mrb[0].mxu0 %v296
      %v385 = vpop.f32.mrb[0].mxu0
      %v386 = vadd.f32 0.0, %v385
      %v387 = vpop.f32.mrb[0].mxu0
      %388 = vmatprep.mubr.f32.mxu0 0.0
      %389 = vmatmul.mubr.f32.gmra.mrb[0].mxu0 %v299
      %v390 = vpop.f32.mrb[0].mxu0
      %v391 = vadd.f32 0.0, %v390
      %v392 = vpop.f32.mrb[0].mxu0
      %393 = vmatprep.mubr.f32.mxu0 0.0
      %394 = vmatmul.mubr.f32.gmra.mrb[0].mxu0 %v302
      %v395 = vpop.f32.mrb[0].mxu0
      %v396 = vadd.f32 0.0, %v395
      %v397 = vpop.f32.mrb[0].mxu0
      %398 = vmatprep.mubr.f32.mxu0 0.0
      %399 = vmatmul.mubr.f32.gmra.mrb[0].mxu0 %v305
      %v400 = vpop.f32.mrb[0].mxu0
      %v401 = vadd.f32 0.0, %v400
      %v402 = vpop.f32.mrb[0].mxu0
      %403 = vmatprep.mubr.f32.mxu0 0.0
      %404 = vmatmul.mubr.f32.gmra.mrb[0].mxu0 %v308
      %v405 = vpop.f32.mrb[0].mxu0
      %v406 = vadd.f32 0.0, %v405
      %v407 = vpop.f32.mrb[0].mxu0
      %408 = vmatprep.mubr.f32.mxu0 0.0
      %409 = vmatmul.mubr.f32.gmra.mrb[0].mxu0 %v311
      %v410 = vpop.f32.mrb[0].mxu0
      %v411 = vadd.f32 0.0, %v410
      %v412 = vpop.f32.mrb[0].mxu0
      %413 = vmatprep.mubr.f32.mxu0 0.0
      %414 = vmatmul.mubr.f32.gmra.mrb[0].mxu0 %v314
      %v415 = vpop.f32.mrb[0].mxu0
      %v416 = vadd.f32 0.0, %v415
      %v417 = vpop.f32.mrb[0].mxu0
      %418 = vmatprep.mubr.f32.mxu0 0.0
      %419 = vmatmul.mubr.f32.gmra.mrb[0].mxu0 %v317
      %v420 = vpop.f32.mrb[0].mxu0
      %v421 = vadd.f32 0.0, %v420
      %v422 = vpop.f32.mrb[0].mxu0
      %423 = vdwg.mxu0
      %v424 = vpack.c.bf16 %v391, %v386
      %v425 = vpack.c.bf16 %v401, %v396
      %v426 = vpack.c.bf16 %v411, %v406
      %v427 = vpack.c.bf16 %v421, %v416
      %v432 = vunpack.c.l.b16 %v424
      %v433 = vunpack.c.h.b16 %v424
      %v434 = vunpack.c.l.b16 %v425
      %v435 = vunpack.c.h.b16 %v425
      %v436 = vunpack.c.l.b16 %v426
      %v437 = vunpack.c.h.b16 %v426
      %v438 = vunpack.c.l.b16 %v427
      %v439 = vunpack.c.h.b16 %v427
      %v440 = vpack.c.b16 %v432, %v432
      %v441 = vpack.c.b16 %v433, %v433
      %v442 = vpack.c.b16 %v434, %v434
      %v443 = vpack.c.b16 %v435, %v435
      %v444 = vpack.c.b16 %v436, %v436
      %v445 = vpack.c.b16 %v437, %v437
      %v446 = vpack.c.b16 %v438, %v438
      %v447 = vpack.c.b16 %v439, %v439
      %vm456 = vcmask 125952
      %457 = vst.msk [vmem:[%s268] sm:$0xf] %vm456, %v440
      %458 = vst.msk [vmem:[%s268 + $0x4] sm:$0xf] %vm456, %v441
      %459 = vst.msk [vmem:[%s268 + $0x8] sm:$0xf] %vm456, %v442
      %460 = vst.msk [vmem:[%s268 + $0xc] sm:$0xf] %vm456, %v443
      %461 = vst.msk [vmem:[%s268 + $0x10] sm:$0xf] %vm456, %v444
      %462 = vst.msk [vmem:[%s268 + $0x14] sm:$0xf] %vm456, %v445
      %463 = vst.msk [vmem:[%s268 + $0x18] sm:$0xf] %vm456, %v446
      %464 = vst.msk [vmem:[%s268 + $0x1c] sm:$0xf] %vm456, %v447
      %v465 = vld [vmem:[%s2] sm:$0x1]
      %v467 = vlaneseq
      %v468 = vshrl.u32 %v467, 7
      %v469 = vsub.s32 0, %v468
      %v470 = vrot.slane %v465, %v469
      %v472 = vmul.f32 %v386, %v470
      %v473 = vmul.f32 %v391, %v470
      %v474 = vmul.f32 %v396, %v470
      %v475 = vmul.f32 %v401, %v470
      %v476 = vmul.f32 %v406, %v470
      %v477 = vmul.f32 %v411, %v470
      %v478 = vmul.f32 %v416, %v470
      %v479 = vmul.f32 %v421, %v470
      %vm480 = vcmask 130048
      %v481 = vsel %vm480, %v472, 0.0
      %482 = vadd.xlane.f32.xlu0 %v481
      %v483 = vpop.xlane.xlu0 %482
      %v484 = vsel %vm480, %v473, 0.0
      %485 = vadd.xlane.f32.xlu0 %v484
      %v486 = vpop.xlane.xlu0 %485
      %v487 = vsel %vm480, %v474, 0.0
      %488 = vadd.xlane.f32.xlu0 %v487
      %v489 = vpop.xlane.xlu0 %488
      %v490 = vsel %vm480, %v475, 0.0
      %491 = vadd.xlane.f32.xlu0 %v490
      %v492 = vpop.xlane.xlu0 %491
      %v493 = vsel %vm480, %v476, 0.0
      %494 = vadd.xlane.f32.xlu0 %v493
      %v495 = vpop.xlane.xlu0 %494
      %v496 = vsel %vm480, %v477, 0.0
      %497 = vadd.xlane.f32.xlu0 %v496
      %v498 = vpop.xlane.xlu0 %497
      %v499 = vsel %vm480, %v478, 0.0
      %500 = vadd.xlane.f32.xlu0 %v499
      %v501 = vpop.xlane.xlu0 %500
      %v502 = vsel %vm480, %v479, 0.0
      %503 = vadd.xlane.f32.xlu0 %v502
      %v504 = vpop.xlane.xlu0 %503
      %vm505 = vcmask 7168
      %506 = vst.msk [vmem:[%s274] sm:$0xff] %vm505, %v483
      %507 = vst.msk [vmem:[%s274 + $0x8] sm:$0xff] %vm505, %v486
      %508 = vst.msk [vmem:[%s274 + $0x10] sm:$0xff] %vm505, %v489
      %509 = vst.msk [vmem:[%s274 + $0x18] sm:$0xff] %vm505, %v492
      %510 = vst.msk [vmem:[%s274 + $0x20] sm:$0xff] %vm505, %v495
      %511 = vst.msk [vmem:[%s274 + $0x28] sm:$0xff] %vm505, %v498
      %512 = vst.msk [vmem:[%s274 + $0x30] sm:$0xff] %vm505, %v501
      %513 = vst.msk [vmem:[%s274 + $0x38] sm:$0xff] %vm505, %v504
      %v514 = vld [vmem:[%s3] sm:$0x1]
      %v516 = vlaneseq
      %v517 = vshrl.u32 %v516, 7
      %v518 = vsub.s32 0, %v517
      %v519 = vrot.slane %v514, %v518
      %v521 = vmul.f32 %v386, %v519
      %v522 = vmul.f32 %v391, %v519
      %v523 = vmul.f32 %v396, %v519
      %v524 = vmul.f32 %v401, %v519
      %v525 = vmul.f32 %v406, %v519
      %v526 = vmul.f32 %v411, %v519
      %v527 = vmul.f32 %v416, %v519
      %v528 = vmul.f32 %v421, %v519
      %v529 = vsel %vm480, %v521, 0.0
      %530 = vadd.xlane.f32.xlu0 %v529
      %v531 = vpop.xlane.xlu0 %530
      %v532 = vsel %vm480, %v522, 0.0
      %533 = vadd.xlane.f32.xlu0 %v532
      %v534 = vpop.xlane.xlu0 %533
      %v535 = vsel %vm480, %v523, 0.0
      %536 = vadd.xlane.f32.xlu0 %v535
      %v537 = vpop.xlane.xlu0 %536
      %v538 = vsel %vm480, %v524, 0.0
      %539 = vadd.xlane.f32.xlu0 %v538
      %v540 = vpop.xlane.xlu0 %539
      %v541 = vsel %vm480, %v525, 0.0
      %542 = vadd.xlane.f32.xlu0 %v541
      %v543 = vpop.xlane.xlu0 %542
      %v544 = vsel %vm480, %v526, 0.0
      %545 = vadd.xlane.f32.xlu0 %v544
      %v546 = vpop.xlane.xlu0 %545
      %v547 = vsel %vm480, %v527, 0.0
      %548 = vadd.xlane.f32.xlu0 %v547
      %v549 = vpop.xlane.xlu0 %548
      %v550 = vsel %vm480, %v528, 0.0
      %551 = vadd.xlane.f32.xlu0 %v550
      %v552 = vpop.xlane.xlu0 %551
      %553 = vst.msk [vmem:[%s280] sm:$0xff] %vm505, %v531
      %554 = vst.msk [vmem:[%s280 + $0x8] sm:$0xff] %vm505, %v534
      %555 = vst.msk [vmem:[%s280 + $0x10] sm:$0xff] %vm505, %v537
      %556 = vst.msk [vmem:[%s280 + $0x18] sm:$0xff] %vm505, %v540
      %557 = vst.msk [vmem:[%s280 + $0x20] sm:$0xff] %vm505, %v543
      %558 = vst.msk [vmem:[%s280 + $0x28] sm:$0xff] %vm505, %v546
      %559 = vst.msk [vmem:[%s280 + $0x30] sm:$0xff] %vm505, %v549
      %560 = vst.msk [vmem:[%s280 + $0x38] sm:$0xff] %vm505, %v552
      %s561 = smul.u32 8, %s18
      %p562 = scmp.lt.s32.totalorder %s561, 31
      %s563 = scalar_select %p562, %s561, 31
      %s564 = smul.addr %s563, 4
      %s565 = scalar_lea.vmem %s4, %s564
      %s566 = smul.u32 8, %s18
      %p567 = scmp.lt.s32.totalorder %s566, 31
      %s568 = scalar_select %p567, %s566, 31
      %s569 = smul.addr %s568, 8
      %s570 = scalar_lea.vmem %s5, %s569
      %s571 = smul.u32 8, %s18
      %p572 = scmp.lt.s32.totalorder %s571, 31
      %s573 = scalar_select %p572, %s571, 31
      %s574 = smul.addr %s573, 8
      %s575 = scalar_lea.vmem %s6, %s574
      // Predicated region
      $region37: #{tpu_custom_call.1} parent=35 // pred_check
        %p576 = pneg %p125
      $region38: #{tpu_custom_call.1} parent=35 // pred_check_branch
        %578 = sbr.rel (%p576) target = $region40
      $region39: #{tpu_custom_call.1} parent=35 // pred_region
        %s579 = smul.u32 8, %s18
      $region40: #{tpu_custom_call.1} parent=35 // pred_fallthru
        _
      // Predicated region
      $region41: #{tpu_custom_call.1} parent=35 // pred_check
        %p580 = pneg %p151
      $region42: #{tpu_custom_call.1} parent=35 // pred_check_branch
        %582 = sbr.rel (%p580) target = $region44
      $region43: #{tpu_custom_call.1} parent=35 // pred_region
        %s583 = smul.u32 8, %s18
      $region44: #{tpu_custom_call.1} parent=35 // pred_fallthru
        _
      // Predicated region
      $region45: #{tpu_custom_call.1} parent=35 // pred_check
        %p584 = pneg %p177
      $region46: #{tpu_custom_call.1} parent=35 // pred_check_branch
        %586 = sbr.rel (%p584) target = $region48
      $region47: #{tpu_custom_call.1} parent=35 // pred_region
        %s587 = smul.u32 8, %s18
      $region48: #{tpu_custom_call.1} parent=35 // pred_fallthru
        _
    $region36: #{tpu_custom_call.1} parent=5 // pred_fallthru
      _
    %p588 = scmp.le.s32.totalorder 2, %s13
    // Predicated region
    $region49: #{tpu_custom_call.1} parent=5 // pred_check
      %p589 = pneg %p588
    $region50: #{tpu_custom_call.1} parent=5 // pred_check_branch
      %591 = sbr.rel (%p589) target = $region52
    $region51: #{tpu_custom_call.1} parent=5 // pred_region
      %s592 = ssub.s32 %s13, 2
      // Predicated region
      $region53: #{tpu_custom_call.1} parent=51 // pred_check
        %p593 = pneg %p131
      $region54: #{tpu_custom_call.1} parent=51 // pred_check_branch
        %595 = sbr.rel (%p593) target = $region56
      $region55: #{tpu_custom_call.1} parent=51 // pred_region
        %s596 = smul.u32 8, %s19
        %p597 = scmp.lt.s32.totalorder %s596, 31
        %s598 = scalar_select %p597, %s596, 31
        %s599 = smul.addr %s598, 4
        %s600 = scalar_lea.vmem %s4, %s599
      $region56: #{tpu_custom_call.1} parent=51 // pred_fallthru
        _
      // Predicated region
      $region57: #{tpu_custom_call.1} parent=51 // pred_check
        %p601 = pneg %p157
      $region58: #{tpu_custom_call.1} parent=51 // pred_check_branch
        %603 = sbr.rel (%p601) target = $region60
      $region59: #{tpu_custom_call.1} parent=51 // pred_region
        %s604 = smul.u32 8, %s19
        %p605 = scmp.lt.s32.totalorder %s604, 31
        %s606 = scalar_select %p605, %s604, 31
        %s607 = smul.addr %s606, 8
        %s608 = scalar_lea.vmem %s5, %s607
      $region60: #{tpu_custom_call.1} parent=51 // pred_fallthru
        _
      // Predicated region
      $region61: #{tpu_custom_call.1} parent=51 // pred_check
        %p609 = pneg %p183
      $region62: #{tpu_custom_call.1} parent=51 // pred_check_branch
        %611 = sbr.rel (%p609) target = $region64
      $region63: #{tpu_custom_call.1} parent=51 // pred_region
        %s612 = smul.u32 8, %s19
        %p613 = scmp.lt.s32.totalorder %s612, 31
        %s614 = scalar_select %p613, %s612, 31
        %s615 = smul.addr %s614, 8
        %s616 = scalar_lea.vmem %s6, %s615
      $region64: #{tpu_custom_call.1} parent=51 // pred_fallthru
        _
    $region52: #{tpu_custom_call.1} parent=5 // pred_fallthru
      _
  $region6: #{tpu_custom_call.1} parent=0 // loop_footer
    %s17 = sadd.s32 1, %s13
  $region7: #{tpu_custom_call.1} parent=0 // loop_footer_branch
    %12 = sbr.rel target = $region3
  $region8: #{tpu_custom_call.1} parent=0 // loop_exit
    _

</llo_original>
